<compile_context>
chip_gen: v5e
topology: v5e:2x2
jax: 0.10.0
libtpu: 0.0.40
codegen_flags: <defaults>
</compile_context>

<pallas_src>
import jax
import jax.numpy as jnp
from jax import lax
from jax.experimental import pallas as pl
from jax.experimental.pallas import tpu as pltpu


def _round_up(x, m):
    return (x + m - 1) // m * m


def dt_block_kernel(x_ref, w_ref, b_ref, o_ref):
    # x_ref: (TP, W, Cin); w_ref: (3, Cin, Cout); b_ref: (1, Cout); o_ref: (TP, Wp, Cout)
    TP, W, _ = x_ref.shape
    Wp = o_ref.shape[1]
    Wc = W - 2                                   # valid conv output width

    # Hoist loop-invariant loads / constants out of the per-row loop.
    w0 = w_ref[0]                                # (Cin, Cout), native dtype -> MXU rate
    w1 = w_ref[1]
    w2 = w_ref[2]
    bias = b_ref[...].astype(jnp.float32)        # (1, Cout)

    # One-hot "take columns 0,2,4,..." matrix: downsampling of the pairwise max is
    # done as a small MXU matmul instead of strided slices / layout-risky reshapes.
    jidx = lax.broadcasted_iota(jnp.int32, (Wp, Wc - 1), 0)
    widx = lax.broadcasted_iota(jnp.int32, (Wp, Wc - 1), 1)
    sel = (widx == 2 * jidx).astype(jnp.float32)  # (Wp, Wc-1)

    def body(q, carry):
        x_q = x_ref[q]                            # (W, Cin)

        # Conv2d(1x3, stride 1, valid): three shifted 2-D matmuls, f32 accumulation.
        acc = jnp.dot(x_q[0:Wc, :], w0, preferred_element_type=jnp.float32)
        acc = acc + jnp.dot(x_q[1:Wc + 1, :], w1, preferred_element_type=jnp.float32)
        acc = acc + jnp.dot(x_q[2:Wc + 2, :], w2, preferred_element_type=jnp.float32)

        # MaxPool2d(1x2, stride (1,2)): pairwise max of two shifted views, then pick
        # every other row with the one-hot matmul.  No Wc/2x masked intermediate.
        pmax = jnp.maximum(acc[0:Wc - 1, :], acc[1:Wc, :])                # (Wc-1, Cout)
        pooled = jnp.dot(sel, pmax, preferred_element_type=jnp.float32)   # (Wp, Cout)

        # Bias commutes with max -> add once on the smaller pooled tensor.
        pooled = pooled + bias

        # Dropout(0.4): identity at inference time.
        # TODO(synk): training-mode dropout (random mask * 1/(1-p)) not implemented.
        o_ref[q, :, :] = pooled.astype(o_ref.dtype)
        return carry

    lax.fori_loop(0, TP, body, 0)


def dt_block_forward(x_nchw, weight, bias, *, vmem_block_budget_bytes=6 * 1024 * 1024):
    """x_nchw: (N, Cin, H, W); weight: (Cout, Cin, 1, 3); bias: (Cout,)
    -> (N, Cout, H, (W-2)//2).  Matches PyTorch DT_block in eval mode."""
    N, Cin, H, W = x_nchw.shape
    Cout = weight.shape[0]
    Wc = W - 2
    Wp = Wc // 2
    assert Wc >= 2 and Wp >= 1, "input width too small for conv(1x3) + pool(1x2)"
    P = N * H
    dtype = x_nchw.dtype
    itemsize = jnp.dtype(dtype).itemsize

    # Channels-last, height-flattened layout (pure-JAX glue outside the kernel).
    x_pwc = jnp.transpose(x_nchw, (0, 2, 3, 1)).reshape(P, W, Cin)
    w_kcc = jnp.transpose(weight[:, :, 0, :], (2, 1, 0)).astype(dtype)   # (3, Cin, Cout)
    b_2d = bias.reshape(1, Cout).astype(jnp.float32)

    # Rows-per-step: biggest tile whose (in + out) block fits the budget; with
    # double buffering this stays well under the 48 MiB limit (and v7x's 64 MiB VMEM).
    row_bytes = (_round_up(W, 8) * _round_up(Cin, 128)
                 + _round_up(Wp, 8) * _round_up(Cout, 128)) * itemsize
    tp = int(vmem_block_budget_bytes // max(row_bytes, 1))
    tp = max(8, min(1024, (tp // 8) * 8))
    tp = min(tp, _round_up(P, 8))
    p_pad = _round_up(P, tp)
    if p_pad != P:
        x_pwc = jnp.pad(x_pwc, ((0, p_pad - P), (0, 0), (0, 0)))

    out = pl.pallas_call(
        dt_block_kernel,
        out_shape=jax.ShapeDtypeStruct((p_pad, Wp, Cout), dtype),
        grid=(p_pad // tp,),
        in_specs=[
            pl.BlockSpec((tp, W, Cin), lambda i: (i, 0, 0)),
            pl.BlockSpec((3, Cin, Cout), lambda i: (0, 0, 0)),
            pl.BlockSpec((1, Cout), lambda i: (0, 0)),
        ],
        out_specs=pl.BlockSpec((tp, Wp, Cout), lambda i: (i, 0, 0)),
        compiler_params=pltpu.CompilerParams(
            dimension_semantics=("parallel",),
            vmem_limit_bytes=48 * 1024 * 1024,
        ),
    )(x_pwc, w_kcc, b_2d)

    out = out[:P].reshape(N, H, Wp, Cout)
    return jnp.transpose(out, (0, 3, 1, 2))


def reference(x, weight, bias):
    """Pure-JAX reference matching PyTorch DT_block (eval mode)."""
    y = lax.conv_general_dilated(
        x, weight, window_strides=(1, 1), padding='VALID',
        dimension_numbers=('NCHW', 'OIHW', 'NCHW'))
    y = y + bias[None, :, None, None]
    Wc = y.shape[3]
    Wp = Wc // 2
    y = y[..., :2 * Wp].reshape(y.shape[0], y.shape[1], y.shape[2], Wp, 2)
    return jnp.max(y, axis=-1)


def _run_case(key, N, Cin, H, W, Cout):
    k1, k2, k3 = jax.random.split(key, 3)
    x = jax.random.normal(k1, (N, Cin, H, W), jnp.float32)
    fan_in = Cin * 1 * 3
    bound = 1.0 / (fan_in ** 0.5)
    weight = jax.random.uniform(k2, (Cout, Cin, 1, 3), jnp.float32, -bound, bound)
    bias = jax.random.uniform(k3, (Cout,), jnp.float32, -bound, bound)

    out = jax.block_until_ready(dt_block_forward(x, weight, bias))
    ref = reference(x, weight, bias)
    assert out.shape == (N, Cout, H, (W - 2) // 2), out.shape
    assert jnp.allclose(out, ref, atol=1e-4, rtol=1e-4), "mismatch vs reference"


if __name__ == "__main__":
    key = jax.random.PRNGKey(0)
    ka, kb = jax.random.split(key)

    # Small shape consistent with the module.
    _run_case(ka, N=2, Cin=4, H=4, W=16, Cout=8)
    # Odd widths / non-multiple-of-8 row count (exercises padding path).
    _run_case(kb, N=2, Cin=9, H=1, W=21, Cout=13)

    print("KERNEL_OK")
</pallas_src>

<mosaic_0001>
module attributes {stable_mosaic.version = 11 : i64} {
  func.func @dt_block_kernel(%arg0: i32, %arg1: memref<8x16x4xf32, #tpu.memory_space<vmem>>, %arg2: memref<3x4x8xf32, #tpu.memory_space<vmem>>, %arg3: memref<1x8xf32, #tpu.memory_space<vmem>>, %arg4: memref<8x7x8xf32, #tpu.memory_space<vmem>>) attributes {dimension_semantics = [#tpu.dimension_semantics<parallel>], iteration_bounds = array<i64: 1>, scalar_prefetch = 0 : i64, scratch_operands = 0 : i64, tpu.core_type = #tpu.core_type<tc>, window_params = [{transform_indices = @transform_0, window_bounds = array<i64: 8, 16, 4>}, {pipeline_mode = #tpu.pipeline_mode<synchronous>, transform_indices = @transform_1, window_bounds = array<i64: 3, 4, 8>}, {pipeline_mode = #tpu.pipeline_mode<synchronous>, transform_indices = @transform_2, window_bounds = array<i64: 1, 8>}, {transform_indices = @transform_3, window_bounds = array<i64: 8, 7, 8>}]} {
    %c0 = arith.constant 0 : index
    %c0_0 = arith.constant 0 : index
    %c0_1 = arith.constant 0 : index
    %0 = vector.load %arg2[%c0, %c0_0, %c0_1] : memref<3x4x8xf32, #tpu.memory_space<vmem>>, vector<1x4x8xf32>
    %1 = vector.shape_cast %0 : vector<1x4x8xf32> to vector<4x8xf32>
    %c1 = arith.constant 1 : index
    %c0_2 = arith.constant 0 : index
    %c0_3 = arith.constant 0 : index
    %2 = vector.load %arg2[%c1, %c0_2, %c0_3] : memref<3x4x8xf32, #tpu.memory_space<vmem>>, vector<1x4x8xf32>
    %3 = vector.shape_cast %2 : vector<1x4x8xf32> to vector<4x8xf32>
    %c2 = arith.constant 2 : index
    %c0_4 = arith.constant 0 : index
    %c0_5 = arith.constant 0 : index
    %4 = vector.load %arg2[%c2, %c0_4, %c0_5] : memref<3x4x8xf32, #tpu.memory_space<vmem>>, vector<1x4x8xf32>
    %5 = vector.shape_cast %4 : vector<1x4x8xf32> to vector<4x8xf32>
    %c0_6 = arith.constant 0 : index
    %c0_7 = arith.constant 0 : index
    %6 = vector.load %arg3[%c0_6, %c0_7] : memref<1x8xf32, #tpu.memory_space<vmem>>, vector<1x8xf32>
    %7 = tpu.iota {dimensions = array<i32: 0>} : vector<7x13xi32>
    %8 = tpu.iota {dimensions = array<i32: 1>} : vector<7x13xi32>
    %c2_i32 = arith.constant 2 : i32
    %9 = vector.broadcast %c2_i32 : i32 to vector<7x13xi32>
    %10 = arith.muli %9, %7 : vector<7x13xi32>
    %11 = arith.cmpi eq, %8, %10 : vector<7x13xi32>
    %12 = arith.extui %11 : vector<7x13xi1> to vector<7x13xi32>
    %13 = arith.sitofp %12 : vector<7x13xi32> to vector<7x13xf32>
    %c0_i32 = arith.constant 0 : i32
    %c8_i32 = arith.constant 8 : i32
    %14 = arith.addi %c0_i32, %c8_i32 : i32
    %c1_i32 = arith.constant 1 : i32
    scf.for %arg5 = %c0_i32 to %14 step %c1_i32  : i32 {
      %15 = arith.index_cast %arg5 : i32 to index
      %c0_9 = arith.constant 0 : index
      %c0_10 = arith.constant 0 : index
      %16 = vector.load %arg1[%15, %c0_9, %c0_10] : memref<8x16x4xf32, #tpu.memory_space<vmem>>, vector<1x16x4xf32>
      %17 = vector.shape_cast %16 : vector<1x16x4xf32> to vector<16x4xf32>
      %18 = vector.extract_strided_slice %17 {offsets = [0, 0], sizes = [14, 4], strides = [1, 1]} : vector<16x4xf32> to vector<14x4xf32>
      %cst = arith.constant dense<0.000000e+00> : vector<14x8xf32>
      %19 = tpu.matmul %18, %1, %cst {dimension_numbers = #tpu.dot_dimension_numbers<[1], [0], [0], [1], [0, 0, 1, 1], [], []>} : vector<14x4xf32>, vector<4x8xf32>, vector<14x8xf32> -> vector<14x8xf32>
      %20 = vector.extract_strided_slice %17 {offsets = [1, 0], sizes = [14, 4], strides = [1, 1]} : vector<16x4xf32> to vector<14x4xf32>
      %cst_11 = arith.constant dense<0.000000e+00> : vector<14x8xf32>
      %21 = tpu.matmul %20, %3, %cst_11 {dimension_numbers = #tpu.dot_dimension_numbers<[1], [0], [0], [1], [0, 0, 1, 1], [], []>} : vector<14x4xf32>, vector<4x8xf32>, vector<14x8xf32> -> vector<14x8xf32>
      %22 = arith.addf %19, %21 : vector<14x8xf32>
      %23 = vector.extract_strided_slice %17 {offsets = [2, 0], sizes = [14, 4], strides = [1, 1]} : vector<16x4xf32> to vector<14x4xf32>
      %cst_12 = arith.constant dense<0.000000e+00> : vector<14x8xf32>
      %24 = tpu.matmul %23, %5, %cst_12 {dimension_numbers = #tpu.dot_dimension_numbers<[1], [0], [0], [1], [0, 0, 1, 1], [], []>} : vector<14x4xf32>, vector<4x8xf32>, vector<14x8xf32> -> vector<14x8xf32>
      %25 = arith.addf %22, %24 : vector<14x8xf32>
      %26 = vector.extract_strided_slice %25 {offsets = [0, 0], sizes = [13, 8], strides = [1, 1]} : vector<14x8xf32> to vector<13x8xf32>
      %27 = vector.extract_strided_slice %25 {offsets = [1, 0], sizes = [13, 8], strides = [1, 1]} : vector<14x8xf32> to vector<13x8xf32>
      %28 = arith.maximumf %26, %27 : vector<13x8xf32>
      %cst_13 = arith.constant dense<0.000000e+00> : vector<7x8xf32>
      %29 = tpu.matmul %13, %28, %cst_13 {dimension_numbers = #tpu.dot_dimension_numbers<[1], [0], [0], [1], [0, 0, 1, 1], [], []>} : vector<7x13xf32>, vector<13x8xf32>, vector<7x8xf32> -> vector<7x8xf32>
      %30 = vector.broadcast %6 : vector<1x8xf32> to vector<7x8xf32>
      %31 = arith.addf %29, %30 : vector<7x8xf32>
      %32 = arith.index_cast %arg5 : i32 to index
      %c0_14 = arith.constant 0 : index
      %c0_15 = arith.constant 0 : index
      %33 = vector.load %arg4[%32, %c0_14, %c0_15] : memref<8x7x8xf32, #tpu.memory_space<vmem>>, vector<1x7x8xf32>
      %34 = vector.shape_cast %33 : vector<1x7x8xf32> to vector<7x8xf32>
      %35 = vector.shape_cast %31 : vector<7x8xf32> to vector<1x7x8xf32>
      tpu.vector_store %arg4[%32, %c0_14, %c0_15], %35 {strides = array<i32>} : memref<8x7x8xf32, #tpu.memory_space<vmem>>, vector<1x7x8xf32>,
    }
    %c8_i32_8 = arith.constant 8 : i32
    return
  }
  func.func @transform_0(%arg0: i32) -> (i32, i32, i32) {
    %c0_i32 = arith.constant 0 : i32
    %c0_i32_0 = arith.constant 0 : i32
    %c0_i32_1 = arith.constant 0 : i32
    return %arg0, %c0_i32, %c0_i32_0 : i32, i32, i32
  }
  func.func @transform_1(%arg0: i32) -> (i32, i32, i32) {
    %c0_i32 = arith.constant 0 : i32
    %c0_i32_0 = arith.constant 0 : i32
    %c0_i32_1 = arith.constant 0 : i32
    %c0_i32_2 = arith.constant 0 : i32
    return %c0_i32, %c0_i32_0, %c0_i32_1 : i32, i32, i32
  }
  func.func @transform_2(%arg0: i32) -> (i32, i32) {
    %c0_i32 = arith.constant 0 : i32
    %c0_i32_0 = arith.constant 0 : i32
    %c0_i32_1 = arith.constant 0 : i32
    return %c0_i32, %c0_i32_0 : i32, i32
  }
  func.func @transform_3(%arg0: i32) -> (i32, i32, i32) {
    %c0_i32 = arith.constant 0 : i32
    %c0_i32_0 = arith.constant 0 : i32
    %c0_i32_1 = arith.constant 0 : i32
    return %arg0, %c0_i32, %c0_i32_0 : i32, i32, i32
  }
}

</mosaic_0001>

<llo_original>
// kernel: tpu_custom_call.1
$region0: #{tpu_custom_call.1}
  #allocation0 [shape = 'u32[]', space=smem, size = 0x4, offset = 0x4, fixed_abs, tag = 'smem constant byte address 0x4 - core index']
  #allocation1 [shape = 'u32[72,128]{1,0:T(1,128)}', space=vmem, size = 0x9000, scoped, tag = 'internal scratch']
  %s0 = inlined_call_operand.vmem [shape: f32[8,16,4], index: 0, kind: input, shape index: {}]
  %s1 = inlined_call_operand.vmem [shape: f32[3,4,8], index: 1, kind: input, shape index: {}]
  %s2 = inlined_call_operand.vmem [shape: f32[1,8], index: 2, kind: input, shape index: {}]
  %s3 = inlined_call_operand.vmem [shape: f32[8,7,8], index: 3, kind: output, shape index: {}]
  %s4 = sld [smem:[#allocation0]]
  $region29: #{tpu_custom_call.1} parent=0
    _
  %s6 = ssub.s32 1, %s4
  %s7 = scalar_select 0, %s6, %s4
  // Predicated region
  $region2: #{tpu_custom_call.1} parent=0 // pred_check
    _
  $region3: #{tpu_custom_call.1} parent=0 // pred_check_branch
    %9 = sbr.rel (0) target = $region5
  $region4: #{tpu_custom_call.1} parent=0 // pred_region
    _
  $region5: #{tpu_custom_call.1} parent=0 // pred_fallthru
    _
  // Predicated region
  $region6: #{tpu_custom_call.1} parent=0 // pred_check
    _
  $region7: #{tpu_custom_call.1} parent=0 // pred_check_branch
    %11 = sbr.rel (0) target = $region9
  $region8: #{tpu_custom_call.1} parent=0 // pred_region
    _
  $region9: #{tpu_custom_call.1} parent=0 // pred_fallthru
    _
  // Predicated region
  $region10: #{tpu_custom_call.1} parent=0 // pred_check
    _
  $region11: #{tpu_custom_call.1} parent=0 // pred_check_branch
    %13 = sbr.rel (0) target = $region13
  $region12: #{tpu_custom_call.1} parent=0 // pred_region
    _
  $region13: #{tpu_custom_call.1} parent=0 // pred_fallthru
    _
  %v14 = vld [vmem:[%s1] sm:$0xf]
  %s15 = scalar_lea.vmem %s1, 4
  %v16 = vld [vmem:[%s15] sm:$0xf]
  %s17 = scalar_lea.vmem %s1, 8
  %v18 = vld [vmem:[%s17] sm:$0xf]
  %v19 = vld [vmem:[%s2] sm:$0x1]
  %v20 = vlaneseq
  %v21 = vshrl.u32 %v20, 7
  %v22 = vlaneseq
  %v23 = vand.u32 %v22, 127
  %v24 = vmul.u32 %v21, 2
  %vm25 = vcmp.eq.s32.totalorder %v23, %v24
  %v26 = vsel %vm25, 1, 0
  %v27 = vcvt.s32.f32 %v26
  loop: start=0, step=1, limit=8
  $region14: #{tpu_custom_call.1} parent=0 // loop_pre_header
    _
  $region15: #{tpu_custom_call.1} parent=0 // loop_header
    %s29 = sphi 0, %s33
    %p30 = scmp.ge.s32.totalorder %s29, 8
  $region16: #{tpu_custom_call.1} parent=0 // loop_header_branch
    %32 = sbr.rel (%p30) target = $region20
  $region17: #{tpu_custom_call.1} parent=0 // loop_body
    %s34 = smul.u32 %s29, 16
    %s35 = scalar_lea.vmem %s0, %s34
    %v36 = vld [vmem:[%s35] sm:$0xff]
    %v37 = vld [vmem:[%s35 + $0x8] sm:$0xff]
    %vm40 = vcmask 1046528
    %v41 = vrot.slane %v36, 1
    %v42 = vrot.slane %v37, 1
    %v43 = vsel %vm40, %v41, %v42
    %vm44 = vcmask 31744
    %v45 = vsel %vm44, %v43, 0
    %v47 = vsel %vm44, %v42, 0
    %vm49 = vcmask 1043456
    %v51 = vsel %vm49, %v16, 0
    %53 = vmatpush.msra.mxu0 0.0
    %54 = vmatpush.msra.mxu0 0.0
    %55 = vmatpush.msra.mxu0 0.0
    %56 = vmatpush.msra.mxu0 0.0
    %57 = vmatpush.msra.mxu0 0.0
    %58 = vmatpush.msra.mxu0 0.0
    %59 = vmatpush.msra.mxu0 0.0
    %60 = vmatpush.msra.mxu0 0.0
    %61 = vmatpush.msra.mxu0 0.0
    %62 = vmatpush.msra.mxu0 0.0
    %63 = vmatpush.msra.mxu0 0.0
    %64 = vmatpush.msra.mxu0 0.0
    %65 = vmatpush.msra.mxu0 0.0
    %66 = vmatpush.msra.mxu0 0.0
    %67 = vmatpush.msra.mxu0 0.0
    %68 = vmatpush.msra.mxu0 %v51
    %69 = vmatmul.f32.gmra.mxu0 %v45
    %v70 = vpop.f32.mrf.mxu0
    %v71 = vadd.f32 0.0, %v70
    %72 = vmatmul.f32.gmra.mxu0 %v47
    %v73 = vpop.f32.mrf.mxu0
    %v74 = vadd.f32 0.0, %v73
    %75 = vdwg.mxu0
    %v76 = vsel %vm44, %v36, 0
    %v78 = vsel %vm44, %v37, 0
    %v81 = vsel %vm49, %v14, 0
    %83 = vmatpush.msra.mxu0 0.0
    %84 = vmatpush.msra.mxu0 0.0
    %85 = vmatpush.msra.mxu0 0.0
    %86 = vmatpush.msra.mxu0 0.0
    %87 = vmatpush.msra.mxu0 0.0
    %88 = vmatpush.msra.mxu0 0.0
    %89 = vmatpush.msra.mxu0 0.0
    %90 = vmatpush.msra.mxu0 0.0
    %91 = vmatpush.msra.mxu0 0.0
    %92 = vmatpush.msra.mxu0 0.0
    %93 = vmatpush.msra.mxu0 0.0
    %94 = vmatpush.msra.mxu0 0.0
    %95 = vmatpush.msra.mxu0 0.0
    %96 = vmatpush.msra.mxu0 0.0
    %97 = vmatpush.msra.mxu0 0.0
    %98 = vmatpush.msra.mxu0 %v81
    %99 = vmatmul.f32.gmra.mxu0 %v76
    %v100 = vpop.f32.mrf.mxu0
    %v101 = vadd.f32 %v71, %v100
    %102 = vmatmul.f32.gmra.mxu0 %v78
    %v103 = vpop.f32.mrf.mxu0
    %v104 = vadd.f32 %v74, %v103
    %105 = vdwg.mxu0
    %vm106 = vcmask 1045504
    %v107 = vrot.slane %v36, 2
    %v108 = vrot.slane %v37, 2
    %v109 = vsel %vm106, %v107, %v108
    %v110 = vsel %vm44, %v109, 0
    %v112 = vsel %vm44, %v108, 0
    %v115 = vsel %vm49, %v18, 0
    %117 = vmatpush.msra.mxu0 0.0
    %118 = vmatpush.msra.mxu0 0.0
    %119 = vmatpush.msra.mxu0 0.0
    %120 = vmatpush.msra.mxu0 0.0
    %121 = vmatpush.msra.mxu0 0.0
    %122 = vmatpush.msra.mxu0 0.0
    %123 = vmatpush.msra.mxu0 0.0
    %124 = vmatpush.msra.mxu0 0.0
    %125 = vmatpush.msra.mxu0 0.0
    %126 = vmatpush.msra.mxu0 0.0
    %127 = vmatpush.msra.mxu0 0.0
    %128 = vmatpush.msra.mxu0 0.0
    %129 = vmatpush.msra.mxu0 0.0
    %130 = vmatpush.msra.mxu0 0.0
    %131 = vmatpush.msra.mxu0 0.0
    %132 = vmatpush.msra.mxu0 %v115
    %133 = vmatmul.f32.gmra.mxu0 %v110
    %v134 = vpop.f32.mrf.mxu0
    %v135 = vadd.f32 0.0, %v134
    %136 = vmatmul.f32.gmra.mxu0 %v112
    %v137 = vpop.f32.mrf.mxu0
    %v138 = vadd.f32 0.0, %v137
    %139 = vdwg.mxu0
    %v140 = vadd.f32 %v101, %v135
    %v141 = vadd.f32 %v104, %v138
    %v144 = vrot.slane %v140, 1
    %v145 = vrot.slane %v141, 1
    %v146 = vsel %vm40, %v144, %v145
    %v149 = vmax.f32 %v140, %v146
    %v150 = vmax.f32 %v141, %v145
    %v152 = vperm.slane %v19, 0
    %vm154 = vcmask 105472
    %v156 = vsel %vm154, %v27, 0
    %vm158 = vcmask 1044480
    %v160 = vsel %vm158, %v150, 0
    %162 = vmatpush.msra.mxu0 0.0
    %163 = vmatpush.msra.mxu0 0.0
    %164 = vmatpush.msra.mxu0 0.0
    %165 = vmatpush.msra.mxu0 0.0
    %166 = vmatpush.msra.mxu0 0.0
    %167 = vmatpush.msra.mxu0 0.0
    %168 = vmatpush.msra.mxu0 0.0
    %169 = vmatpush.msra.mxu0 0.0
    %170 = vmatpush.msra.mxu0 0.0
    %171 = vmatpush.msra.mxu0 0.0
    %172 = vmatpush.msra.mxu0 0.0
    %173 = vmatpush.msra.mxu0 0.0
    %174 = vmatpush.msra.mxu0 0.0
    %175 = vmatpush.msra.mxu0 0.0
    %176 = vmatpush.msra.mxu0 %v160
    %177 = vmatpush.msra.mxu0 %v149
    %178 = vmatmul.f32.gmra.mxu0 %v156
    %v179 = vpop.f32.mrf.mxu0
    %v180 = vadd.f32 %v152, %v179
    %181 = vdwg.mxu0
    %s182 = smul.u32 %s29, 8
    %s183 = scalar_lea.vmem %s3, %s182
    %vm184 = vcmask 63488
    %185 = vst.msk [vmem:[%s183] sm:$0x7f] %vm184, %v180
  $region18: #{tpu_custom_call.1} parent=0 // loop_footer
    %s33 = sadd.s32 1, %s29
  $region19: #{tpu_custom_call.1} parent=0 // loop_footer_branch
    %28 = sbr.rel target = $region15
  $region20: #{tpu_custom_call.1} parent=0 // loop_exit
    _
  // Predicated region
  $region21: #{tpu_custom_call.1} parent=0 // pred_check
    _
  $region22: #{tpu_custom_call.1} parent=0 // pred_check_branch
    %187 = sbr.rel (0) target = $region24
  $region23: #{tpu_custom_call.1} parent=0 // pred_region
    _
  $region24: #{tpu_custom_call.1} parent=0 // pred_fallthru
    _
  // Predicated region
  $region25: #{tpu_custom_call.1} parent=0 // pred_check
    _
  $region26: #{tpu_custom_call.1} parent=0 // pred_check_branch
    %189 = sbr.rel (0) target = $region28
  $region27: #{tpu_custom_call.1} parent=0 // pred_region
    _
  $region28: #{tpu_custom_call.1} parent=0 // pred_fallthru
    _

</llo_original>
